<compile_context>
chip_gen: v7x
topology: tpu7x:2x2x1
jax: 0.10.0
libtpu: 0.0.40
codegen_flags: <defaults>
</compile_context>

<pallas_src>
import functools

import jax
import jax.numpy as jnp
from jax.experimental import pallas as pl
from jax.experimental.pallas import tpu as pltpu

EPS = 1e-8  # matches RMSNorm(epsilon=1e-08)


def _round_up(n, m):
    return ((n + m - 1) // m) * m


def _vmem_budget_bytes():
    """Generation-aware VMEM budget for the pallas_call (leaves compiler headroom)."""
    phys = 128 * 1024 * 1024  # v5e/v6e physical VMEM per TensorCore
    try:
        info = pltpu.get_tpu_info()
        phys = int(getattr(info, "vmem_capacity_bytes", phys))
    except Exception:
        pass
    # 3/4 of physical (48 MiB on v7x, 96 MiB on v5e/v6e), capped at 100 MiB.
    return min((phys * 3) // 4, 100 * 1024 * 1024)


def _pick_tile_rows(R, D, in_itemsize, out_itemsize, vmem_budget, sublane):
    """Largest row tile whose double-buffered in/out blocks + f32 intermediates fit."""
    # 2x input block + 2x output block (double-buffered) + ~3 tile-sized f32
    # intermediates materialized by the kernel body.
    bytes_per_row = D * (2 * in_itemsize + 2 * out_itemsize + 3 * 4)
    tm = vmem_budget // max(bytes_per_row, 1)
    tm = min(int(tm), 1024, _round_up(R, sublane))   # amortize ~0.35us/step, don't over-tile tiny R
    tm = max(sublane, (tm // sublane) * sublane)     # native sublane multiple -> unmasked vst
    return int(tm)


def rmsnorm_kernel(x_ref, g_ref, o_ref, *, eps, d_actual):
    """One grid step normalizes a (TM, Dp) block of rows.

    x_ref : (TM, Dp) input rows (Dp = D padded to a lane multiple; pad cols are 0)
    g_ref : (1, Dp)  RMSNorm weight, already f32 (broadcast over rows)
    o_ref : (TM, Dp) output rows
    """
    x = x_ref[...].astype(jnp.float32)                      # (TM, Dp)
    ss = jnp.sum(x * x, axis=-1, keepdims=True)             # (TM, 1); pad cols contribute 0
    inv = jax.lax.rsqrt(ss * (1.0 / d_actual) + eps)        # 1 / rms over the real D
    o_ref[...] = (x * inv * g_ref[...]).astype(o_ref.dtype)


def rmsnorm_forward(x, weight, *, eps=EPS, tm=None):
    """x: [..., D] -> [..., D]  (RMSNorm.forward)."""
    orig_shape = x.shape
    D = orig_shape[-1]
    xr = x.reshape(-1, D)
    R = xr.shape[0]

    # Lane-dense feature dim (no-op when D % 128 == 0, i.e. production d_model).
    D_pad = _round_up(D, 128)
    if D_pad != D:
        xr = jnp.pad(xr, ((0, 0), (0, D_pad - D)))

    g2d = weight.astype(jnp.float32).reshape(1, D)
    if D_pad != D:
        g2d = jnp.pad(g2d, ((0, 0), (0, D_pad - D)))

    in_itemsize = jnp.dtype(x.dtype).itemsize
    out_itemsize = in_itemsize
    sublane = max(8, 32 // in_itemsize)          # 8 for f32, 16 for bf16, 32 for int8/fp8
    vmem_budget = _vmem_budget_bytes()

    if tm is None:
        tm_eff = _pick_tile_rows(R, D_pad, in_itemsize, out_itemsize, vmem_budget, sublane)
    else:
        tm_eff = max(sublane, _round_up(min(int(tm), _round_up(R, sublane)), sublane))

    grid = (pl.cdiv(R, tm_eff),)                 # partial last block handled by Pallas; rows independent

    cost = pl.CostEstimate(
        flops=5 * R * D,                         # square, reduce, scale, gamma mul
        transcendentals=R,                       # one rsqrt per row
        bytes_accessed=R * D * (in_itemsize + out_itemsize) + D * 4,
    )

    kernel = functools.partial(rmsnorm_kernel, eps=float(eps), d_actual=float(D))
    out = pl.pallas_call(
        kernel,
        out_shape=jax.ShapeDtypeStruct((R, D_pad), x.dtype),
        grid=grid,
        in_specs=[
            pl.BlockSpec((tm_eff, D_pad), lambda i: (i, 0)),   # x rows
            pl.BlockSpec((1, D_pad), lambda i: (0, 0)),        # gamma (resident, constant index)
        ],
        out_specs=pl.BlockSpec((tm_eff, D_pad), lambda i: (i, 0)),
        compiler_params=pltpu.CompilerParams(
            dimension_semantics=("parallel",),                 # rows independent
            vmem_limit_bytes=int(vmem_budget),
        ),
        cost_estimate=cost,
    )(xr, g2d)

    if D_pad != D:
        out = out[:, :D]
    return out.reshape(orig_shape)


def rmsnorm_reference(x, weight, eps=EPS):
    """Pure-JAX reference of the PyTorch forward."""
    x32 = x.astype(jnp.float32)
    rms = jnp.sqrt(jnp.mean(x32 * x32, axis=-1, keepdims=True) + eps)
    return ((x32 / rms) * weight.astype(jnp.float32)).astype(x.dtype)


if __name__ == "__main__":
    batch, seq, d_model = 2, 8, 32

    key = jax.random.PRNGKey(0)
    kx, kw = jax.random.split(key)
    x = jax.random.normal(kx, (batch, seq, d_model), dtype=jnp.float32)
    # PyTorch init is ones; perturb slightly so the gamma multiply is exercised.
    weight = 1.0 + 0.1 * jax.random.normal(kw, (d_model,), dtype=jnp.float32)

    out = rmsnorm_forward(x, weight)
    out = jax.block_until_ready(out)

    ref = rmsnorm_reference(x, weight)
    assert out.shape == x.shape
    assert jnp.allclose(out, ref, atol=1e-4, rtol=1e-4), "mismatch vs reference"

    print("KERNEL_OK")
</pallas_src>

<mosaic_0001>
module attributes {stable_mosaic.version = 11 : i64} {
  func.func @rmsnorm_kernel(%arg0: i32, %arg1: memref<16x128xf32, #tpu.memory_space<vmem>>, %arg2: memref<1x128xf32, #tpu.memory_space<vmem>>, %arg3: memref<16x128xf32, #tpu.memory_space<vmem>>) attributes {dimension_semantics = [#tpu.dimension_semantics<parallel>], iteration_bounds = array<i64: 1>, scalar_prefetch = 0 : i64, scratch_operands = 0 : i64, tpu.core_type = #tpu.core_type<tc>, window_params = [{transform_indices = @transform_0, window_bounds = array<i64: 16, 128>}, {pipeline_mode = #tpu.pipeline_mode<synchronous>, transform_indices = @transform_1, window_bounds = array<i64: 1, 128>}, {transform_indices = @transform_2, window_bounds = array<i64: 16, 128>}]} {
    %c0 = arith.constant 0 : index
    %c0_0 = arith.constant 0 : index
    %0 = vector.load %arg1[%c0, %c0_0] : memref<16x128xf32, #tpu.memory_space<vmem>>, vector<16x128xf32>
    %1 = arith.mulf %0, %0 : vector<16x128xf32>
    %cst = arith.constant dense<0.000000e+00> : vector<16xf32>
    %2 = vector.multi_reduction <add>, %1, %cst [1] : vector<16x128xf32> to vector<16xf32>
    %3 = vector.shape_cast %2 : vector<16xf32> to vector<16x1xf32>
    %cst_1 = arith.constant 3.125000e-02 : f32
    %4 = vector.broadcast %cst_1 : f32 to vector<16x1xf32>
    %5 = arith.mulf %3, %4 : vector<16x1xf32>
    %cst_2 = arith.constant 9.99999993E-9 : f32
    %6 = vector.broadcast %cst_2 : f32 to vector<16x1xf32>
    %7 = arith.addf %5, %6 : vector<16x1xf32>
    %8 = math.rsqrt %7 : vector<16x1xf32>
    %9 = vector.broadcast %8 : vector<16x1xf32> to vector<16x128xf32>
    %10 = arith.mulf %0, %9 : vector<16x128xf32>
    %c0_3 = arith.constant 0 : index
    %c0_4 = arith.constant 0 : index
    %11 = vector.load %arg2[%c0_3, %c0_4] : memref<1x128xf32, #tpu.memory_space<vmem>>, vector<1x128xf32>
    %12 = vector.broadcast %11 : vector<1x128xf32> to vector<16x128xf32>
    %13 = arith.mulf %10, %12 : vector<16x128xf32>
    %c0_5 = arith.constant 0 : index
    %c0_6 = arith.constant 0 : index
    %14 = vector.load %arg3[%c0_5, %c0_6] : memref<16x128xf32, #tpu.memory_space<vmem>>, vector<16x128xf32>
    tpu.vector_store %arg3[%c0_5, %c0_6], %13 {strides = array<i32>} : memref<16x128xf32, #tpu.memory_space<vmem>>, vector<16x128xf32>,
    return
  }
  func.func @transform_0(%arg0: i32) -> (i32, i32) {
    %c0_i32 = arith.constant 0 : i32
    %c0_i32_0 = arith.constant 0 : i32
    return %arg0, %c0_i32 : i32, i32
  }
  func.func @transform_1(%arg0: i32) -> (i32, i32) {
    %c0_i32 = arith.constant 0 : i32
    %c0_i32_0 = arith.constant 0 : i32
    %c0_i32_1 = arith.constant 0 : i32
    return %c0_i32, %c0_i32_0 : i32, i32
  }
  func.func @transform_2(%arg0: i32) -> (i32, i32) {
    %c0_i32 = arith.constant 0 : i32
    %c0_i32_0 = arith.constant 0 : i32
    return %arg0, %c0_i32 : i32, i32
  }
}

</mosaic_0001>

<llo_original>
// kernel: tpu_custom_call.1
$region0: #{tpu_custom_call.1}
  #allocation0 [shape = 'u32[]', space=smem, size = 0x4, offset = 0x4, fixed_abs, tag = 'smem constant byte address 0x4 - core index']
  #allocation1 [shape = 'u32[144,128]{1,0:T(1,128)}', space=vmem, size = 0x12000, scoped, tag = 'internal scratch']
  %s0 = inlined_call_operand.hbm [shape: f32[16,128], index: 0, kind: input, shape index: {}]
  %s1 = inlined_call_operand.hbm [shape: f32[1,128], index: 1, kind: input, shape index: {}]
  %s2 = inlined_call_operand.hbm [shape: f32[16,128], index: 2, kind: output, shape index: {}]
  %s3 = sld [smem:[#allocation0]]
  $region26: #{tpu_custom_call.1} parent=0
    _
  %s5 = ssub.s32 1, %s3
  %s6 = scalar_select 0, %s5, %s3
  $region1: #{tpu_custom_call.1} parent=0
    #allocation2 [shape = 'u8[8192]{0}', space=vmem, size = 0x2000, scoped, tag = 'input window, operand 0, single buffered']
    #allocation3 [shape = 's32[1]{0}', space=sflag, size = 0x4, scoped, tag = 'scoped memory for tpu_custom_call.1']
    #allocation4 [shape = 's32[1]{0}', space=sflag, size = 0x4, scoped, tag = 'scoped memory for tpu_custom_call.1']
    #allocation5 [shape = 'u8[512]{0}', space=vmem, size = 0x400, scoped, tag = 'input window, operand 1, single buffered']
    #allocation6 [shape = 's32[1]{0}', space=sflag, size = 0x4, scoped, tag = 'scoped memory for tpu_custom_call.1']
    #allocation7 [shape = 'u8[8192]{0}', space=vmem, size = 0x2000, scoped, tag = 'output window, operand 0, single buffered']
    %7 = vsyncpa [#allocation3], 0
    %8 = vsyncpa [#allocation6], 0
    %9 = vsyncpa [#allocation4], 0
    // Predicated region
    $region2: #{tpu_custom_call.1} parent=1 // pred_check
      _
    $region3: #{tpu_custom_call.1} parent=1 // pred_check_branch
      %11 = sbr.rel (0) target = $region5
    $region4: #{tpu_custom_call.1} parent=1 // pred_region
      %s13 = ssub.s32 256, 256
      %14 = vsyncadd [#allocation3], %s13
      %s15 = sshll.u32 [#allocation2], 4
      %s16 = int_to_ptr.vmem [resolvable:$true] %s15
      %21 = dma.hbm_to_vmem [thread:$0]  %s0, 256, %s16, [#allocation3], 128, 128, 8
    $region5: #{tpu_custom_call.1} parent=1 // pred_fallthru
      _
    // Predicated region
    $region6: #{tpu_custom_call.1} parent=1 // pred_check
      _
    $region7: #{tpu_custom_call.1} parent=1 // pred_check_branch
      %23 = sbr.rel (0) target = $region9
    $region8: #{tpu_custom_call.1} parent=1 // pred_region
      %s25 = ssub.s32 16, 16
      %26 = vsyncadd [#allocation6], %s25
      %s28 = sshll.u32 [#allocation5], 4
      %s29 = int_to_ptr.vmem [resolvable:$true] %s28
      %31 = dma.hbm_to_vmem [thread:$0]  %s1, 16, %s29, [#allocation6]
    $region9: #{tpu_custom_call.1} parent=1 // pred_fallthru
      _
    // Predicated region
    $region10: #{tpu_custom_call.1} parent=1 // pred_check
      _
    $region11: #{tpu_custom_call.1} parent=1 // pred_check_branch
      %33 = sbr.rel (0) target = $region13
    $region12: #{tpu_custom_call.1} parent=1 // pred_region
      %34 = dma.done [#allocation3], 256
    $region13: #{tpu_custom_call.1} parent=1 // pred_fallthru
      _
    // Predicated region
    $region14: #{tpu_custom_call.1} parent=1 // pred_check
      _
    $region15: #{tpu_custom_call.1} parent=1 // pred_check_branch
      %36 = sbr.rel (0) target = $region17
    $region16: #{tpu_custom_call.1} parent=1 // pred_region
      %37 = dma.done [#allocation6], 16
    $region17: #{tpu_custom_call.1} parent=1 // pred_fallthru
      _
    %v38 = vld [vmem:[#allocation2] sm:$0xff]
    %v39 = vld [vmem:[#allocation2 + $0x8] sm:$0xff]
    %v40 = vmul.f32 %v38, %v38
    %v41 = vmul.f32 %v39, %v39
    %42 = vadd.xlane.f32.xlu0 %v40
    %v43 = vpop.xlane.xlu0 %42
    %44 = vadd.xlane.f32.xlu0 %v41
    %v45 = vpop.xlane.xlu0 %44
    %v46 = vmul.f32 %v43, 0.03125
    %v47 = vmul.f32 %v45, 0.03125
    %v48 = vadd.f32 %v46, 1e-08
    %v49 = vadd.f32 %v47, 1e-08
    %v50 = vrsqrt.pop %v48
    %v51 = vrsqrt.pop %v49
    %v52 = vmul.f32 %v38, %v50
    %v53 = vmul.f32 %v39, %v51
    %v54 = vld [vmem:[#allocation5] sm:$0x1]
    %v56 = vlaneseq
    %v57 = vshrl.u32 %v56, 7
    %v58 = vsub.s32 0, %v57
    %v59 = vrot.slane %v54, %v58
    %v61 = vmul.f32 %v52, %v59
    %v62 = vmul.f32 %v53, %v59
    %63 = vst [vmem:[#allocation7] sm:$0xff] %v61
    %64 = vst [vmem:[#allocation7 + $0x8] sm:$0xff] %v62
    // Predicated region
    $region18: #{tpu_custom_call.1} parent=1 // pred_check
      _
    $region19: #{tpu_custom_call.1} parent=1 // pred_check_branch
      %66 = sbr.rel (0) target = $region21
    $region20: #{tpu_custom_call.1} parent=1 // pred_region
      %s68 = ssub.s32 256, 256
      %69 = vsyncadd [#allocation4], %s68
      %s70 = sshll.u32 [#allocation7], 4
      %s71 = int_to_ptr.vmem [resolvable:$true] %s70
      %76 = dma.vmem_to_hbm [thread:$0]  %s71, 256, %s2, [#allocation4], 128, 128, 8
    $region21: #{tpu_custom_call.1} parent=1 // pred_fallthru
      _
    // Predicated region
    $region22: #{tpu_custom_call.1} parent=1 // pred_check
      _
    $region23: #{tpu_custom_call.1} parent=1 // pred_check_branch
      %78 = sbr.rel (0) target = $region25
    $region24: #{tpu_custom_call.1} parent=1 // pred_region
      %79 = dma.done [#allocation4], 256
    $region25: #{tpu_custom_call.1} parent=1 // pred_fallthru
      _
    %80 = vsyncpa [#allocation3], 1
    %81 = vsyncpa [#allocation6], 1
    %82 = vsyncpa [#allocation4], 1

</llo_original>
